<compile_context>
chip_gen: v7x
topology: tpu7x:2x2x1
jax: 0.10.0
libtpu: 0.0.40
codegen_flags: <defaults>
</compile_context>

<pallas_src>
import numpy as np
import jax
import jax.numpy as jnp
from jax import lax
from jax.experimental import pallas as pl
from jax.experimental.pallas import tpu as pltpu

LANE = 128
VMEM_BUDGET = 40 * 1024 * 1024   # target per-step working set (fits every gen)
VMEM_LIMIT = 56 * 1024 * 1024    # requested scoped VMEM (< 64 MiB physical, v7x)


def _round_up(v, m):
    return ((v + m - 1) // m) * m


def _largest_row_tile(n, cap):
    """Largest multiple of 16 that divides n and is <= max(cap, 16)."""
    cap = max(16, int(cap))
    best = 16
    t = 16
    while t <= min(cap, n):
        if n % t == 0:
            best = t
        t += 16
    return best


# ---------------------------------------------------------------------------
# Kernel 0: XW = X @ W   (hoisted out of encode; streamed over X row tiles)
# ---------------------------------------------------------------------------
def xw_kernel(x_ref, w_ref, xw_ref):
    xw_ref[...] = jnp.dot(x_ref[...], w_ref[...],
                          preferred_element_type=jnp.float32
                          ).astype(jnp.bfloat16)


# ---------------------------------------------------------------------------
# Kernel 1: encode.  z = sigmoid(adj_tile @ XW), streamed over adj row tiles.
# adj arrives as f32 and is cast to bf16 on the VPU (hides under the DMA).
# Emits Z in f32 (the module's self.hidden) and bf16 (decode operand).
# ---------------------------------------------------------------------------
def encode_kernel(adj_ref, xw_ref, zf32_ref, zb16_ref):
    a = adj_ref[...].astype(jnp.bfloat16)                       # [tm, Np]
    s = jnp.dot(a, xw_ref[...], preferred_element_type=jnp.float32)
    z = jax.nn.sigmoid(s)                                       # [tm, h2p]
    zf32_ref[...] = z
    zb16_ref[...] = z.astype(jnp.bfloat16)


# ---------------------------------------------------------------------------
# Kernel 2a: ZWt = Z @ W.T  (tiny streaming matmul; used when h2p >= h1p)
# dot_general with swapped contraction dims: W.T is never materialized.
# ---------------------------------------------------------------------------
def zwt_kernel(z_ref, w_ref, zwt_ref):
    zwt_ref[...] = lax.dot_general(
        z_ref[...], w_ref[...],
        dimension_numbers=(((1,), (1,)), ((), ())),
        preferred_element_type=jnp.float32).astype(jnp.bfloat16)


# ---------------------------------------------------------------------------
# Kernel 2b: decode.  a_pred_tile = adj_tile @ ZWt   (single matmul per tile)
# ---------------------------------------------------------------------------
def decode_kernel(adj_ref, zwt_ref, apred_ref):
    a = adj_ref[...].astype(jnp.bfloat16)
    apred_ref[...] = jnp.dot(a, zwt_ref[...],
                             preferred_element_type=jnp.float32)


# ---------------------------------------------------------------------------
# Kernel 2c: reassociated decode (adj @ Z) @ W.T — only when h2p < h1p, where
# contracting the big N-matmul over h2p genuinely saves MACs.
# ---------------------------------------------------------------------------
def decode_reassoc_kernel(adj_ref, z_ref, w_ref, apred_ref):
    a = adj_ref[...].astype(jnp.bfloat16)
    az = jnp.dot(a, z_ref[...], preferred_element_type=jnp.float32)
    apred_ref[...] = lax.dot_general(
        az.astype(jnp.bfloat16), w_ref[...],
        dimension_numbers=(((1,), (1,)), ((), ())),
        preferred_element_type=jnp.float32)


def gae_forward(adj, x, w_mean):
    N, h1 = x.shape
    h2 = w_mean.shape[1]
    h1p = _round_up(h1, LANE)
    h2p = _round_up(h2, LANE)
    Np = _round_up(N, 16)

    # Small operands: pad feature dims to the 128-lane width and cast to bf16
    # in the wrapper (cheap relative to adj).  Zero-padded W rows/columns kill
    # every contribution of padded lanes in the contractions below, so the
    # kept [:N, :h1] / [:N, :h2] regions are exact.
    x_b = jnp.pad(x, ((0, Np - N), (0, h1p - h1))).astype(jnp.bfloat16)
    w_b = jnp.pad(w_mean, ((0, h1p - h1), (0, h2p - h2))).astype(jnp.bfloat16)
    adj_p = adj if Np == N else jnp.pad(adj, ((0, Np - N), (0, Np - N)))

    # ---- tile selection from a VMEM budget --------------------------------
    # per grid step (adj-streaming kernels):
    #   adj f32 tile (double buffered):   2 * tm * Np * 4
    #   outputs (double buffered, worst): 2 * tm * (4*h2p + 2*h2p + 4*h1p)
    #   resident bf16 operand (2 bufs):   2 * Np * max(h1p, h2p) * 2
    resident = 2 * Np * max(h1p, h2p) * 2
    per_row = 2 * Np * 4 + 2 * (4 * h2p + 2 * h2p + 4 * h1p)
    cap = (VMEM_BUDGET - resident) // per_row
    cap = min(cap, Np // 2)          # >= 2 grid steps when possible (v7x 2 TCs)
    tm_adj = _largest_row_tile(Np, cap)
    tm_small = _largest_row_tile(Np, min(Np // 2, 2048))

    cparams = pltpu.CompilerParams(
        dimension_semantics=("parallel",),
        vmem_limit_bytes=VMEM_LIMIT,
    )

    # ---- XW = X @ W (once, bf16) -------------------------------------------
    xw_b = pl.pallas_call(
        xw_kernel,
        out_shape=jax.ShapeDtypeStruct((Np, h2p), jnp.bfloat16),
        grid=(Np // tm_small,),
        in_specs=[
            pl.BlockSpec((tm_small, h1p), lambda i: (i, 0)),
            pl.BlockSpec((h1p, h2p), lambda i: (0, 0)),
        ],
        out_specs=pl.BlockSpec((tm_small, h2p), lambda i: (i, 0)),
        compiler_params=cparams,
    )(x_b, w_b)

    # ---- encode: Z = sigmoid(adj @ XW) -------------------------------------
    z_f32, z_b16 = pl.pallas_call(
        encode_kernel,
        out_shape=(jax.ShapeDtypeStruct((Np, h2p), jnp.float32),
                   jax.ShapeDtypeStruct((Np, h2p), jnp.bfloat16)),
        grid=(Np // tm_adj,),
        in_specs=[
            pl.BlockSpec((tm_adj, Np), lambda i: (i, 0)),   # adj row tile (f32)
            pl.BlockSpec((Np, h2p), lambda i: (0, 0)),      # XW resident (bf16)
        ],
        out_specs=(
            pl.BlockSpec((tm_adj, h2p), lambda i: (i, 0)),
            pl.BlockSpec((tm_adj, h2p), lambda i: (i, 0)),
        ),
        compiler_params=cparams,
    )(adj_p, xw_b)

    # ---- decode: A_pred = adj @ (Z @ W.T) -----------------------------------
    if h2p < h1p:
        # big contraction is cheaper over h2p -> keep (adj @ Z) @ W.T in-kernel
        a_pred_pad = pl.pallas_call(
            decode_reassoc_kernel,
            out_shape=jax.ShapeDtypeStruct((Np, h1p), jnp.float32),
            grid=(Np // tm_adj,),
            in_specs=[
                pl.BlockSpec((tm_adj, Np), lambda i: (i, 0)),
                pl.BlockSpec((Np, h2p), lambda i: (0, 0)),   # Z resident (bf16)
                pl.BlockSpec((h1p, h2p), lambda i: (0, 0)),  # W resident (bf16)
            ],
            out_specs=pl.BlockSpec((tm_adj, h1p), lambda i: (i, 0)),
            compiler_params=cparams,
        )(adj_p, z_b16, w_b)
    else:
        # h1p == h2p at lane granularity -> precompute ZWt once, decode is a
        # single adj_tile @ ZWt (removes the per-tile second matmul + az cast).
        zwt_b = pl.pallas_call(
            zwt_kernel,
            out_shape=jax.ShapeDtypeStruct((Np, h1p), jnp.bfloat16),
            grid=(Np // tm_small,),
            in_specs=[
                pl.BlockSpec((tm_small, h2p), lambda i: (i, 0)),
                pl.BlockSpec((h1p, h2p), lambda i: (0, 0)),
            ],
            out_specs=pl.BlockSpec((tm_small, h1p), lambda i: (i, 0)),
            compiler_params=cparams,
        )(z_b16, w_b)

        a_pred_pad = pl.pallas_call(
            decode_kernel,
            out_shape=jax.ShapeDtypeStruct((Np, h1p), jnp.float32),
            grid=(Np // tm_adj,),
            in_specs=[
                pl.BlockSpec((tm_adj, Np), lambda i: (i, 0)),
                pl.BlockSpec((Np, h1p), lambda i: (0, 0)),   # ZWt resident
            ],
            out_specs=pl.BlockSpec((tm_adj, h1p), lambda i: (i, 0)),
            compiler_params=cparams,
        )(adj_p, zwt_b)

    a_pred = a_pred_pad[:N, :h1]
    hidden = z_f32[:N, :h2]
    return a_pred, hidden


# ---------------------------------------------------------------------------
# Deterministic parameter / input construction (mirrors glorot_init + adj).
# ---------------------------------------------------------------------------
def glorot_init(key, input_dim, output_dim):
    init_range = np.sqrt(6.0 / (input_dim + output_dim))
    u = jax.random.uniform(key, (input_dim, output_dim), dtype=jnp.float32)
    return u * 2.0 * init_range - init_range


def make_normalized_adj(key, n):
    # symmetric random adjacency with self loops, D^-1/2 A D^-1/2 normalized
    a = (jax.random.uniform(key, (n, n)) < 0.2).astype(jnp.float32)
    a = jnp.maximum(a, a.T)
    a = a + jnp.eye(n, dtype=jnp.float32)
    d = jnp.sum(a, axis=1)
    d_inv_sqrt = 1.0 / jnp.sqrt(d)
    return a * d_inv_sqrt[:, None] * d_inv_sqrt[None, :]


if __name__ == "__main__":
    # small shapes consistent with the module:
    #   N nodes = 64, pre_args.hidden1_dim = 32, pre_args.hidden2_dim = 16
    N, HIDDEN1, HIDDEN2 = 64, 32, 16

    key = jax.random.PRNGKey(0)
    k_adj, k_x, k_w = jax.random.split(key, 3)

    adj = make_normalized_adj(k_adj, N)                          # [N, N]
    x = jax.random.normal(k_x, (N, HIDDEN1), dtype=jnp.float32)  # [N, hidden1]
    w_mean = glorot_init(k_w, HIDDEN1, HIDDEN2)                  # [h1, h2]
    # TODO(synk): base_gcn / gcn_out weights are never used by GAE.forward, so
    # they are intentionally not materialized here.

    a_pred, hidden = gae_forward(adj, x, w_mean)
    a_pred = jax.block_until_ready(a_pred)
    hidden = jax.block_until_ready(hidden)

    # --- reference matching the kernel's bf16-operand / f32-accum precision --
    def _rt(v):
        return v.astype(jnp.bfloat16).astype(jnp.float32)

    adj_r, x_r, w_r = _rt(adj), _rt(x), _rt(w_mean)
    xw_r = _rt(x_r @ w_r)
    z_ref = jax.nn.sigmoid(adj_r @ xw_r)
    h1p = _round_up(HIDDEN1, LANE)
    h2p = _round_up(HIDDEN2, LANE)
    if h2p < h1p:
        az_r = _rt(adj_r @ _rt(z_ref))
        a_ref = az_r @ w_r.T
    else:
        zwt_r = _rt(_rt(z_ref) @ w_r.T)
        a_ref = adj_r @ zwt_r
    assert jnp.allclose(hidden, z_ref, atol=1e-4, rtol=1e-4)
    assert jnp.allclose(a_pred, a_ref, atol=1e-4, rtol=1e-4)

    # --- sanity check vs. the original pure-f32 torch.mm semantics ----------
    # (bf16 MXU operands -> loose tolerance)
    z_f = jax.nn.sigmoid(adj @ (x @ w_mean))
    a_f = adj @ (z_f @ w_mean.T)
    assert jnp.allclose(hidden, z_f, atol=5e-2, rtol=5e-2)
    assert jnp.allclose(a_pred, a_f, atol=5e-2, rtol=5e-2)

    print("KERNEL_OK")
</pallas_src>

<mosaic_0001>
module attributes {stable_mosaic.version = 11 : i64} {
  func.func @xw_kernel(%arg0: i32, %arg1: memref<32x128xbf16, #tpu.memory_space<vmem>>, %arg2: memref<128x128xbf16, #tpu.memory_space<vmem>>, %arg3: memref<32x128xbf16, #tpu.memory_space<vmem>>) attributes {dimension_semantics = [#tpu.dimension_semantics<parallel>], iteration_bounds = array<i64: 2>, scalar_prefetch = 0 : i64, scratch_operands = 0 : i64, tpu.core_type = #tpu.core_type<tc>, window_params = [{transform_indices = @transform_0, window_bounds = array<i64: 32, 128>}, {pipeline_mode = #tpu.pipeline_mode<synchronous>, transform_indices = @transform_1, window_bounds = array<i64: 128, 128>}, {transform_indices = @transform_2, window_bounds = array<i64: 32, 128>}]} {
    %c0 = arith.constant 0 : index
    %c0_0 = arith.constant 0 : index
    %0 = vector.load %arg1[%c0, %c0_0] : memref<32x128xbf16, #tpu.memory_space<vmem>>, vector<32x128xbf16>
    %c0_1 = arith.constant 0 : index
    %c0_2 = arith.constant 0 : index
    %1 = vector.load %arg2[%c0_1, %c0_2] : memref<128x128xbf16, #tpu.memory_space<vmem>>, vector<128x128xbf16>
    %cst = arith.constant dense<0.000000e+00> : vector<32x128xf32>
    %2 = tpu.matmul %0, %1, %cst {dimension_numbers = #tpu.dot_dimension_numbers<[1], [0], [0], [1], [0, 0, 1, 1], [], []>} : vector<32x128xbf16>, vector<128x128xbf16>, vector<32x128xf32> -> vector<32x128xf32>
    %3 = arith.truncf %2 : vector<32x128xf32> to vector<32x128xbf16>
    %c0_3 = arith.constant 0 : index
    %c0_4 = arith.constant 0 : index
    %4 = vector.load %arg3[%c0_3, %c0_4] : memref<32x128xbf16, #tpu.memory_space<vmem>>, vector<32x128xbf16>
    tpu.vector_store %arg3[%c0_3, %c0_4], %3 {strides = array<i32>} : memref<32x128xbf16, #tpu.memory_space<vmem>>, vector<32x128xbf16>,
    return
  }
  func.func @transform_0(%arg0: i32) -> (i32, i32) {
    %c0_i32 = arith.constant 0 : i32
    %c0_i32_0 = arith.constant 0 : i32
    return %arg0, %c0_i32 : i32, i32
  }
  func.func @transform_1(%arg0: i32) -> (i32, i32) {
    %c0_i32 = arith.constant 0 : i32
    %c0_i32_0 = arith.constant 0 : i32
    %c0_i32_1 = arith.constant 0 : i32
    return %c0_i32, %c0_i32_0 : i32, i32
  }
  func.func @transform_2(%arg0: i32) -> (i32, i32) {
    %c0_i32 = arith.constant 0 : i32
    %c0_i32_0 = arith.constant 0 : i32
    return %arg0, %c0_i32 : i32, i32
  }
}

</mosaic_0001>

<llo_original>
// kernel: tpu_custom_call.1
$region0: #{tpu_custom_call.1}
  #allocation0 [shape = 'u32[]', space=smem, size = 0x4, offset = 0x4, fixed_abs, tag = 'smem constant byte address 0x4 - core index']
  #allocation1 [shape = 'u32[144,128]{1,0:T(1,128)}', space=vmem, size = 0x12000, scoped, tag = 'internal scratch']
  %s0 = inlined_call_operand.hbm [shape: bf16[64,128], index: 0, kind: input, shape index: {}]
  %s1 = inlined_call_operand.hbm [shape: bf16[128,128], index: 1, kind: input, shape index: {}]
  %s2 = inlined_call_operand.hbm [shape: bf16[64,128], index: 2, kind: output, shape index: {}]
  %s3 = sld [smem:[#allocation0]]
  $region49: #{tpu_custom_call.1} parent=0
    _
  %s5 = ssub.s32 1, %s3
  %s6 = scalar_select 0, %s5, %s3
  $region1: #{tpu_custom_call.1} parent=0
    #allocation2 [shape = 'u8[16384]{0}', space=vmem, size = 0x4000, scoped, tag = 'input window, operand 0']
    #allocation3 [shape = 's32[2]{0}', space=sflag, size = 0x8, scoped, tag = 'scoped memory for tpu_custom_call.1']
    #allocation4 [shape = 's32[2]{0}', space=sflag, size = 0x8, scoped, tag = 'scoped memory for tpu_custom_call.1']
    #allocation5 [shape = 'u8[32768]{0}', space=vmem, size = 0x8000, scoped, tag = 'input window, operand 1, single buffered']
    #allocation6 [shape = 's32[1]{0}', space=sflag, size = 0x4, scoped, tag = 'scoped memory for tpu_custom_call.1']
    #allocation7 [shape = 'u8[16384]{0}', space=vmem, size = 0x4000, scoped, tag = 'output window, operand 0']
    %7 = vsyncpa [#allocation3], 0
    %s8 = scalar_lea.sflag [#allocation3], 1
    %9 = vsyncpa %s8, 0
    %10 = vsyncpa [#allocation6], 0
    %11 = vsyncpa [#allocation4], 0
    %s12 = scalar_lea.sflag [#allocation4], 1
    %13 = vsyncpa %s12, 0
    loop: start=0, step=1, limit=4
    $region2: #{tpu_custom_call.1} parent=1 // loop_pre_header
      _
    $region3: #{tpu_custom_call.1} parent=1 // loop_header
      %s15 = sphi 0, %s19
      %p16 = scmp.ge.s32.totalorder %s15, 4
      %s25 = sphi 0, %s27
      %s28 = sphi 0, %s25
      %s29 = sphi 0, %s28
      %s45 = sphi 0, %s29
      %s49 = sphi 0, %s49
      %s51 = sphi 0, %s49
      %s52 = sphi 0, %s51
      %s66 = sphi 0, %s52
      %s72 = sphi 0, %s74
      %s75 = sphi 0, %s72
      %s76 = sphi 0, %s75
      %s92 = sphi 0, %s76
    $region4: #{tpu_custom_call.1} parent=1 // loop_header_branch
      %18 = sbr.rel (%p16) target = $region8
    $region5: #{tpu_custom_call.1} parent=1 // loop_body
      %s20 = ssub.s32 %s15, 1
      %s21 = ssub.s32 %s15, 2
      %s22 = sadd.s32 %s15, 1
      %s23 = ssub.s32 %s15, %s22
      %p24 = scmp.eq.s32.totalorder %s23, 0
      %s26 = sadd.s32 %s25, 1
      %s27 = scalar_select %p24, %s25, %s26
      %p30 = pneg %p24
      %p31 = scmp.eq.s32.totalorder %s15, 1
      %p32 = por %p30, %p31
      %p33 = scmp.ne.s32.totalorder %s25, %s28
      %p34 = scmp.eq.s32.totalorder %s15, 0
      %p35 = por %p33, %p34
      %p36 = scmp.ne.s32.totalorder %s25, %s28
      %p37 = scmp.eq.s32.totalorder %s20, 1
      %p38 = por %p36, %p37
      %p39 = scmp.ne.s32.totalorder %s28, %s29
      %p40 = scmp.eq.s32.totalorder %s20, 0
      %p41 = por %p39, %p40
      %p42 = scmp.ne.s32.totalorder %s28, %s29
      %p43 = scmp.eq.s32.totalorder %s21, 1
      %p44 = por %p42, %p43
      %p46 = scmp.ne.s32.totalorder %s29, %s45
      %p47 = scmp.eq.s32.totalorder %s21, 0
      %p48 = por %p46, %p47
      %s50 = sadd.s32 %s49, 1
      %p53 = scmp.eq.s32.totalorder %s15, 1
      %p54 = scmp.ne.s32.totalorder %s49, %s51
      %p55 = scmp.eq.s32.totalorder %s15, 0
      %p56 = por %p54, %p55
      %p57 = scmp.ne.s32.totalorder %s49, %s51
      %p58 = scmp.eq.s32.totalorder %s20, 1
      %p59 = por %p57, %p58
      %p60 = scmp.ne.s32.totalorder %s51, %s52
      %p61 = scmp.eq.s32.totalorder %s20, 0
      %p62 = por %p60, %p61
      %p63 = scmp.ne.s32.totalorder %s51, %s52
      %p64 = scmp.eq.s32.totalorder %s21, 1
      %p65 = por %p63, %p64
      %p67 = scmp.ne.s32.totalorder %s52, %s66
      %p68 = scmp.eq.s32.totalorder %s21, 0
      %p69 = por %p67, %p68
      %s70 = ssub.s32 %s15, %s22
      %p71 = scmp.eq.s32.totalorder %s70, 0
      %s73 = sadd.s32 %s72, 1
      %s74 = scalar_select %p71, %s72, %s73
      %p77 = pneg %p71
      %p78 = scmp.eq.s32.totalorder %s15, 1
      %p79 = por %p77, %p78
      %p80 = scmp.ne.s32.totalorder %s72, %s75
      %p81 = scmp.eq.s32.totalorder %s15, 0
      %p82 = por %p80, %p81
      %p83 = scmp.ne.s32.totalorder %s72, %s75
      %p84 = scmp.eq.s32.totalorder %s20, 1
      %p85 = por %p83, %p84
      %p86 = scmp.ne.s32.totalorder %s75, %s76
      %p87 = scmp.eq.s32.totalorder %s20, 0
      %p88 = por %p86, %p87
      %p89 = scmp.ne.s32.totalorder %s75, %s76
      %p90 = scmp.eq.s32.totalorder %s21, 1
      %p91 = por %p89, %p90
      %p93 = scmp.ne.s32.totalorder %s76, %s92
      %p94 = scmp.eq.s32.totalorder %s21, 0
      %p95 = por %p93, %p94
      %p96 = scmp.le.s32.totalorder 1, %s15
      %p97 = scmp.lt.s32.totalorder %s15, 3
      %p98 = pnand %p96, %p97
      %p99 = pneg %p98
      // Predicated region
      $region9: #{tpu_custom_call.1} parent=5 // pred_check
        _
      $region10: #{tpu_custom_call.1} parent=5 // pred_check_branch
        %101 = sbr.rel (%p98) target = $region12
      $region11: #{tpu_custom_call.1} parent=5 // pred_region
        %s102 = ssub.s32 %s15, 1
        // Predicated region
        $region13: #{tpu_custom_call.1} parent=11 // pred_check
          %p103 = pneg %p62
        $region14: #{tpu_custom_call.1} parent=11 // pred_check_branch
          %105 = sbr.rel (%p103) target = $region16
        $region15: #{tpu_custom_call.1} parent=11 // pred_region
          %s107 = ssub.s32 1024, 1024
          %108 = vsyncadd [#allocation6], %s107
          %s109 = sshll.u32 [#allocation5], 4
          %s110 = int_to_ptr.vmem [resolvable:$true] %s109
          %115 = dma.hbm_to_vmem [thread:$0]  %s1, 1024, %s110, [#allocation6], 64, 64, 4
        $region16: #{tpu_custom_call.1} parent=11 // pred_fallthru
          _
      $region12: #{tpu_custom_call.1} parent=5 // pred_fallthru
        _
      %p116 = scmp.lt.s32.totalorder %s15, 2
      // Predicated region
      $region17: #{tpu_custom_call.1} parent=5 // pred_check
        %p117 = pneg %p116
      $region18: #{tpu_custom_call.1} parent=5 // pred_check_branch
        %119 = sbr.rel (%p117) target = $region20
      $region19: #{tpu_custom_call.1} parent=5 // pred_region
        // Predicated region
        $region21: #{tpu_custom_call.1} parent=19 // pred_check
          %p120 = pneg %p35
        $region22: #{tpu_custom_call.1} parent=19 // pred_check_branch
          %122 = sbr.rel (%p120) target = $region24
        $region23: #{tpu_custom_call.1} parent=19 // pred_region
          %s123 = sand.u32 %s25, 1
          %s124 = scalar_lea.sflag [#allocation3], %s123
          %s125 = sand.u32 %s25, 1
          %s126 = smul.addr %s125, 16
          %s127 = scalar_lea.vmem [#allocation2], %s126
          %s128 = smul.u32 4, %s15
          %s130 = ssub.s32 256, 256
          %131 = vsyncadd %s124, %s130
          %s132 = smul.addr %s128, 64
          %s133 = scalar_lea.hbm %s0, %s132
          %s134 = sshll.u32 %s127, 4
          %s135 = int_to_ptr.vmem [resolvable:$true] %s134
          %140 = dma.hbm_to_vmem [thread:$0]  %s133, 256, %s135, %s124, 64, 64, 4
        $region24: #{tpu_custom_call.1} parent=19 // pred_fallthru
          _
      $region20: #{tpu_custom_call.1} parent=5 // pred_fallthru
        _
      %p141 = scmp.le.s32.totalorder 1, %s15
      %p142 = scmp.lt.s32.totalorder %s15, 3
      %p143 = pnand %p141, %p142
      %p144 = pneg %p143
      // Predicated region
      $region25: #{tpu_custom_call.1} parent=5 // pred_check
        _
      $region26: #{tpu_custom_call.1} parent=5 // pred_check_branch
        %146 = sbr.rel (%p143) target = $region28
      $region27: #{tpu_custom_call.1} parent=5 // pred_region
        %s147 = ssub.s32 %s15, 1
        %s148 = sand.u32 %s28, 1
        %s149 = scalar_lea.sflag [#allocation3], %s148
        %s150 = sand.u32 %s28, 1
        %s151 = smul.addr %s150, 16
        %s152 = scalar_lea.vmem [#allocation2], %s151
        // Predicated region
        $region29: #{tpu_custom_call.1} parent=27 // pred_check
          %p153 = pneg %p41
        $region30: #{tpu_custom_call.1} parent=27 // pred_check_branch
          %155 = sbr.rel (%p153) target = $region32
        $region31: #{tpu_custom_call.1} parent=27 // pred_region
          %156 = dma.done %s149, 256
        $region32: #{tpu_custom_call.1} parent=27 // pred_fallthru
          _
        // Predicated region
        $region33: #{tpu_custom_call.1} parent=27 // pred_check
          %p157 = pneg %p62
        $region34: #{tpu_custom_call.1} parent=27 // pred_check_branch
          %159 = sbr.rel (%p157) target = $region36
        $region35: #{tpu_custom_call.1} parent=27 // pred_region
          %160 = dma.done [#allocation6], 1024
        $region36: #{tpu_custom_call.1} parent=27 // pred_fallthru
          _
        %s161 = sand.u32 %s28, 1
        %s162 = scalar_lea.sflag [#allocation3], %s161
        %s163 = sand.u32 %s28, 1
        %s164 = smul.addr %s163, 16
        %s165 = scalar_lea.vmem [#allocation2], %s164
        %p166 = pneg %p41
        %p167 = pneg %p38
        %p168 = pneg %p62
        %p169 = pneg %p59
        %p170 = pneg %p88
        %p171 = pneg %p85
        %s172 = sand.u32 %s75, 1
        %s173 = scalar_lea.sflag [#allocation4], %s172
        %s174 = sand.u32 %s75, 1
        %s175 = smul.addr %s174, 16
        %s176 = scalar_lea.vmem [#allocation7], %s175
        %s177 = smul.u32 4, %s20
        %s178 = smul.u32 4, %s20
        %v180 = vld [vmem:[%s152] sm:$0xf]
        %v181 = vld [vmem:[%s152 + $0x4] sm:$0xf]
        %v182 = vld [vmem:[%s152 + $0x8] sm:$0xf]
        %v183 = vld [vmem:[%s152 + $0xc] sm:$0xf]
        %v184 = vld [vmem:[#allocation5] sm:$0xf]
        %v185 = vld [vmem:[#allocation5 + $0x4] sm:$0xf]
        %v186 = vld [vmem:[#allocation5 + $0x8] sm:$0xf]
        %v187 = vld [vmem:[#allocation5 + $0xc] sm:$0xf]
        %v188 = vld [vmem:[#allocation5 + $0x10] sm:$0xf]
        %v189 = vld [vmem:[#allocation5 + $0x14] sm:$0xf]
        %v190 = vld [vmem:[#allocation5 + $0x18] sm:$0xf]
        %v191 = vld [vmem:[#allocation5 + $0x1c] sm:$0xf]
        %v192 = vld [vmem:[#allocation5 + $0x20] sm:$0xf]
        %v193 = vld [vmem:[#allocation5 + $0x24] sm:$0xf]
        %v194 = vld [vmem:[#allocation5 + $0x28] sm:$0xf]
        %v195 = vld [vmem:[#allocation5 + $0x2c] sm:$0xf]
        %v196 = vld [vmem:[#allocation5 + $0x30] sm:$0xf]
        %v197 = vld [vmem:[#allocation5 + $0x34] sm:$0xf]
        %v198 = vld [vmem:[#allocation5 + $0x38] sm:$0xf]
        %v199 = vld [vmem:[#allocation5 + $0x3c] sm:$0xf]
        %v204 = vunpack.c.l.b16 %v180
        %v205 = vunpack.c.l.b16 %v181
        %v206 = vunpack.c.l.b16 %v182
        %v207 = vunpack.c.l.b16 %v183
        %v208 = vpack.c.b16 %v205, %v204
        %v209 = vpack.c.b16 %v207, %v206
        %v228 = vunpack.c.l.b16 %v184
        %v229 = vunpack.c.l.b16 %v185
        %v230 = vunpack.c.l.b16 %v186
        %v231 = vunpack.c.l.b16 %v187
        %v232 = vunpack.c.l.b16 %v188
        %v233 = vunpack.c.l.b16 %v189
        %v234 = vunpack.c.l.b16 %v190
        %v235 = vunpack.c.l.b16 %v191
        %v236 = vunpack.c.l.b16 %v192
        %v237 = vunpack.c.l.b16 %v193
        %v238 = vunpack.c.l.b16 %v194
        %v239 = vunpack.c.l.b16 %v195
        %v240 = vunpack.c.l.b16 %v196
        %v241 = vunpack.c.l.b16 %v197
        %v242 = vunpack.c.l.b16 %v198
        %v243 = vunpack.c.l.b16 %v199
        %v244 = vpack.c.b16 %v229, %v228
        %v245 = vpack.c.b16 %v231, %v230
        %v246 = vpack.c.b16 %v233, %v232
        %v247 = vpack.c.b16 %v235, %v234
        %v248 = vpack.c.b16 %v237, %v236
        %v249 = vpack.c.b16 %v239, %v238
        %v250 = vpack.c.b16 %v241, %v240
        %v251 = vpack.c.b16 %v243, %v242
        %260 = vmatprep.subr.bf16.mxu0 0
        %261 = vmatpush1.bf16.msra.mxu0 %v244
        %262 = vmatprep.subr.bf16.mxu0 0
        %263 = vmatpush1.bf16.msra.mxu0 %v245
        %264 = vmatprep.subr.bf16.mxu0 0
        %265 = vmatpush1.bf16.msra.mxu0 %v246
        %266 = vmatprep.subr.bf16.mxu0 0
        %267 = vmatpush1.bf16.msra.mxu0 %v247
        %268 = vmatprep.subr.bf16.mxu0 0
        %269 = vmatpush1.bf16.msra.mxu0 %v248
        %270 = vmatprep.subr.bf16.mxu0 0
        %271 = vmatpush1.bf16.msra.mxu0 %v249
        %272 = vmatprep.subr.bf16.mxu0 0
        %273 = vmatpush1.bf16.msra.mxu0 %v250
        %274 = vmatprep.subr.bf16.mxu0 0
        %275 = vmatpush1.bf16.msra.mxu0 %v251
        %276 = vmatprep.subr.bf16.mxu0 0
        %277 = vmatpush1.bf16.msra.mxu0 0
        %278 = vmatprep.subr.bf16.mxu0 0
        %279 = vmatpush1.bf16.msra.mxu0 0
        %280 = vmatprep.subr.bf16.mxu0 0
        %281 = vmatpush1.bf16.msra.mxu0 0
        %282 = vmatprep.subr.bf16.mxu0 0
        %283 = vmatpush1.bf16.msra.mxu0 0
        %284 = vmatprep.subr.bf16.mxu0 0
        %285 = vmatpush1.bf16.msra.mxu0 0
        %286 = vmatprep.subr.bf16.mxu0 0
        %287 = vmatpush1.bf16.msra.mxu0 0
        %288 = vmatprep.subr.bf16.mxu0 0
        %289 = vmatpush1.bf16.msra.mxu0 0
        %290 = vmatprep.subr.bf16.mxu0 0
        %291 = vmatpush1.bf16.msra.mxu0 0
        %292 = vmatprep.mubr.bf16.mxu0 0
        %293 = vmatmul.mubr.bf16.gmra.mrb[0].mxu0 %v208
        %v294 = vpop.f32.mrb[0].mxu0
        %v295 = vadd.f32 0.0, %v294
        %v296 = vpop.f32.mrb[0].mxu0
        %v297 = vpop.f32.mrb[0].mxu0
        %v298 = vadd.f32 0.0, %v297
        %v299 = vpop.f32.mrb[0].mxu0
        %300 = vmatprep.mubr.bf16.mxu0 0
        %301 = vmatmul.mubr.bf16.gmra.mrb[0].mxu0 %v209
        %v302 = vpop.f32.mrb[0].mxu0
        %v303 = vadd.f32 0.0, %v302
        %v304 = vpop.f32.mrb[0].mxu0
        %v305 = vpop.f32.mrb[0].mxu0
        %v306 = vadd.f32 0.0, %v305
        %v307 = vpop.f32.mrb[0].mxu0
        %308 = vdwg.mxu0
        %v309 = vpack.c.bf16 %v298, %v295
        %v310 = vpack.c.bf16 %v306, %v303
        %v313 = vunpack.c.l.b16 %v309
        %v314 = vunpack.c.h.b16 %v309
        %v315 = vunpack.c.l.b16 %v310
        %v316 = vunpack.c.h.b16 %v310
        %v317 = vpack.c.b16 %v313, %v313
        %v318 = vpack.c.b16 %v314, %v314
        %v319 = vpack.c.b16 %v315, %v315
        %v320 = vpack.c.b16 %v316, %v316
        %325 = vst [vmem:[%s176] sm:$0xf] %v317
        %326 = vst [vmem:[%s176 + $0x4] sm:$0xf] %v318
        %327 = vst [vmem:[%s176 + $0x8] sm:$0xf] %v319
        %328 = vst [vmem:[%s176 + $0xc] sm:$0xf] %v320
        %s329 = sand.u32 %s75, 1
        %s330 = scalar_lea.sflag [#allocation4], %s329
        %s331 = sand.u32 %s75, 1
        %s332 = smul.addr %s331, 16
        %s333 = scalar_lea.vmem [#allocation7], %s332
        // Predicated region
        $region37: #{tpu_custom_call.1} parent=27 // pred_check
          %p334 = pneg %p85
        $region38: #{tpu_custom_call.1} parent=27 // pred_check_branch
          %336 = sbr.rel (%p334) target = $region40
        $region39: #{tpu_custom_call.1} parent=27 // pred_region
          %s337 = smul.u32 4, %s20
          %s339 = ssub.s32 256, 256
          %340 = vsyncadd %s330, %s339
          %s341 = smul.addr %s337, 64
          %s342 = scalar_lea.hbm %s2, %s341
          %s343 = sshll.u32 %s333, 4
          %s344 = int_to_ptr.vmem [resolvable:$true] %s343
          %349 = dma.vmem_to_hbm [thread:$0]  %s344, 256, %s342, %s330, 64, 64, 4
        $region40: #{tpu_custom_call.1} parent=27 // pred_fallthru
          _
      $region28: #{tpu_custom_call.1} parent=5 // pred_fallthru
        _
      %p350 = scmp.le.s32.totalorder 2, %s15
      // Predicated region
      $region41: #{tpu_custom_call.1} parent=5 // pred_check
        %p351 = pneg %p350
      $region42: #{tpu_custom_call.1} parent=5 // pred_check_branch
        %353 = sbr.rel (%p351) target = $region44
      $region43: #{tpu_custom_call.1} parent=5 // pred_region
        %s354 = ssub.s32 %s15, 2
        // Predicated region
        $region45: #{tpu_custom_call.1} parent=43 // pred_check
          %p355 = pneg %p91
        $region46: #{tpu_custom_call.1} parent=43 // pred_check_branch
          %357 = sbr.rel (%p355) target = $region48
        $region47: #{tpu_custom_call.1} parent=43 // pred_region
          %s358 = sand.u32 %s76, 1
          %s359 = scalar_lea.sflag [#allocation4], %s358
          %s360 = sand.u32 %s76, 1
          %s361 = smul.addr %s360, 16
          %s362 = scalar_lea.vmem [#allocation7], %s361
          %363 = dma.done %s359, 256
        $region48: #{tpu_custom_call.1} parent=43 // pred_fallthru
          _
      $region44: #{tpu_custom_call.1} parent=5 // pred_fallthru
        _
    $region6: #{tpu_custom_call.1} parent=1 // loop_footer
      %s19 = sadd.s32 1, %s15
    $region7: #{tpu_custom_call.1} parent=1 // loop_footer_branch
      %14 = sbr.rel target = $region3
    $region8: #{tpu_custom_call.1} parent=1 // loop_exit
      _
    %364 = vsyncpa [#allocation3], 1
    %s365 = scalar_lea.sflag [#allocation3], 1
    %366 = vsyncpa %s365, 1
    %367 = vsyncpa [#allocation6], 1
    %368 = vsyncpa [#allocation4], 1
    %s369 = scalar_lea.sflag [#allocation4], 1
    %370 = vsyncpa %s369, 1

</llo_original>
